<compile_context>
chip_gen: v7x
topology: tpu7x:2x2x1
jax: 0.10.0
libtpu: 0.0.40
codegen_flags: <defaults>
</compile_context>

<pallas_src>
import functools

import jax
import jax.numpy as jnp
from jax.experimental import pallas as pl
from jax.experimental.pallas import tpu as pltpu

LANE = 128      # TPU lane width (last dim)
SUBLANE = 8     # f32 sublane width (second-to-last dim)
_LN_EPS = 1e-5


def _round_up(n, m):
    return ((n + m - 1) // m) * m


# ----------------------------------------------------------------------------
# Fused kernel: all hidden linear(+LN)+ReLU layers, then linear+tanh, one call.
# ----------------------------------------------------------------------------
def _make_actor_kernel(hidden_true, hidden_pad, act_true, layer_norm, mxu_dtype):
    n_hidden = len(hidden_true)

    def kernel(*refs):
        x_ref = refs[0]
        o_ref = refs[-1]
        prm = refs[1:-1]    # [W_0, bgb_0, ..., W_{n-1}, bgb_{n-1}, W_mu, b_mu]

        # LN lane masks, built ONCE (hoisted out of the unrolled layer loop):
        # JAX does not CSE broadcast_in_dim, so per-layer construction would
        # re-emit a full iota + compare for every layer.
        masks = {}
        if layer_norm:
            for h_t, h_p in zip(hidden_true, hidden_pad):
                if h_p != h_t and (h_t, h_p) not in masks:
                    lane = jax.lax.broadcasted_iota(jnp.int32, (1, h_p), 1)
                    masks[(h_t, h_p)] = lane < h_t

        # Cast once; activations are carried in the MXU operand dtype between
        # layers (halves their live footprint).  Elementwise math stays f32.
        x = x_ref[...].astype(mxu_dtype)          # (TILE_B, d_in_pad)

        for i in range(n_hidden):
            w_ref = prm[2 * i]                    # (K_pad, H_pad) in mxu_dtype
            bgb = prm[2 * i + 1][...]             # (3, H_pad) f32: [bias; gamma; beta]
            h_t, h_p = hidden_true[i], hidden_pad[i]

            # MXU matmul, f32 accumulation.
            y = jnp.dot(x, w_ref[...], preferred_element_type=jnp.float32)
            y = y + bgb[0:1, :]                   # bias (padded lanes stay 0)

            if layer_norm:
                # Invariant (established by pack_actor_params): padded weight
                # columns / bias / gamma / beta are exact zeros, so padded
                # lanes of y are exactly 0 and summing all h_p lanes while
                # dividing by the TRUE width is exact.
                inv_h = 1.0 / float(h_t)
                mean = jnp.sum(y, axis=-1, keepdims=True) * inv_h
                centered = y - mean
                if h_p != h_t:
                    centered = jnp.where(masks[(h_t, h_p)], centered, 0.0)
                var = jnp.sum(centered * centered, axis=-1, keepdims=True) * inv_h
                y = centered * jax.lax.rsqrt(var + _LN_EPS)
                y = y * bgb[1:2, :] + bgb[2:3, :]   # padded gamma/beta are 0

            # ReLU in f32, then narrow for the next MXU operand.
            x = jnp.maximum(y, 0.0).astype(mxu_dtype)

        w_mu_ref = prm[-2]                        # (H_pad, A_pad) in mxu_dtype
        b_mu = prm[-1][...]                       # (1, A_pad) f32
        y = jnp.dot(x, w_mu_ref[...], preferred_element_type=jnp.float32) + b_mu
        # Only the TRUE action columns are stored: narrow output stream, no
        # wrapper-side slice of a 128-lane padded HBM buffer.
        o_ref[...] = jnp.tanh(y[:, :act_true]).astype(o_ref.dtype)

    return kernel


# ----------------------------------------------------------------------------
# Parameter init (synthetic, mirrors shapes of the PyTorch __init__) + packing
# ----------------------------------------------------------------------------
def init_actor_params(key, input_dims, fc_dims, n_actions):
    """Weights are stored as [in, out] (already transposed for x @ W)."""
    params = {"fcs": [], "lns": []}
    dims = [input_dims] + list(fc_dims)
    for i in range(len(fc_dims)):
        key, kw, kb = jax.random.split(key, 3)
        bound = 1.0 / float(dims[i]) ** 0.5
        w = jax.random.uniform(kw, (dims[i], dims[i + 1]), jnp.float32, -bound, bound)
        b = jax.random.uniform(kb, (dims[i + 1],), jnp.float32, -bound, bound)
        params["fcs"].append((w, b))
        # nn.LayerNorm defaults: gamma=1, beta=0.
        params["lns"].append((jnp.ones((dims[i + 1],), jnp.float32),
                              jnp.zeros((dims[i + 1],), jnp.float32)))
    key, kw, kb = jax.random.split(key, 3)
    bound = 1.0 / float(fc_dims[-1]) ** 0.5
    params["mu"] = (
        jax.random.uniform(kw, (fc_dims[-1], n_actions), jnp.float32, -bound, bound),
        jax.random.uniform(kb, (n_actions,), jnp.float32, -bound, bound),
    )
    return params


def pack_actor_params(params, mxu_dtype, d_in_pad):
    """Pack weights for the fused kernel.

    - Layer-0 K is padded only to `d_in_pad` (MXU-operand sublane multiple),
      NOT to 128 lanes — the state is streamed at (almost) its true width.
    - All other feature dims are padded to a 128-lane multiple.
    - Each layer's (bias, gamma, beta) is packed into one (3, H_pad) array.

    HARD INVARIANT the kernel's LayerNorm relies on: every padded weight
    column, bias, gamma and beta entry is EXACTLY zero, so padded lanes of the
    activations stay exactly zero through the whole network.  Re-zero the pad
    if these arrays are ever produced by training / loading."""
    packed = []
    k_pad = d_in_pad
    for (w, b), (g, beta) in zip(params["fcs"], params["lns"]):
        din, dout = w.shape
        dout_p = _round_up(dout, LANE)
        w_p = jnp.zeros((k_pad, dout_p), mxu_dtype).at[:din, :dout].set(
            w.astype(mxu_dtype))
        bgb = (jnp.zeros((3, dout_p), jnp.float32)
               .at[0, :dout].set(b)
               .at[1, :dout].set(g)
               .at[2, :dout].set(beta))
        packed += [w_p, bgb]
        k_pad = dout_p
    w_mu, b_mu = params["mu"]
    din, dout = w_mu.shape
    dout_p = _round_up(dout, LANE)
    w_mu_p = jnp.zeros((k_pad, dout_p), mxu_dtype).at[:din, :dout].set(
        w_mu.astype(mxu_dtype))
    b_mu_p = jnp.zeros((1, dout_p), jnp.float32).at[0, :dout].set(b_mu)
    packed += [w_mu_p, b_mu_p]
    return packed


# ----------------------------------------------------------------------------
# Forward: one fused pallas_call, batch-tiled grid.
# ----------------------------------------------------------------------------
@functools.partial(jax.jit,
                   static_argnames=("layer_norm", "mxu_dtype", "max_tile_b"))
def actor_forward(params, state, layer_norm=True, mxu_dtype=jnp.bfloat16,
                  max_tile_b=1024):
    B, d_in = state.shape
    hidden_true = tuple(w.shape[1] for (w, _) in params["fcs"])
    act_true = params["mu"][0].shape[1]

    # Layer-0 K: sublane multiple for the MXU operand dtype (16 for bf16,
    # 8 for f32) — NOT lane-padded to 128.
    in_sub = 16 if mxu_dtype == jnp.bfloat16 else SUBLANE
    d_in_p = _round_up(d_in, in_sub)
    # Hidden widths stay 128-lane padded: intermediates never touch HBM and
    # this keeps MXU columns / vector stores lane-dense.  (Do NOT widen to 256
    # on v6e/v7x unless fc_dims actually grows to >= 256.)
    hidden_pad = tuple(_round_up(h, LANE) for h in hidden_true)
    act_pad = _round_up(act_true, LANE)   # mu MXU columns only; never hits HBM.

    # ---- Batch tiling --------------------------------------------------
    # VMEM is NOT the constraint here (~1-2 MiB used vs 64-128 MiB physical).
    # Constraints: (a) balanced tiles so batch padding waste stays < 8 rows +
    # one partial tile, (b) >= 2 grid steps when the batch allows it so the
    # "parallel" axis can shard across v7x's two TensorCores.
    b8 = _round_up(max(B, SUBLANE), SUBLANE)
    n_tiles = pl.cdiv(b8, max_tile_b)
    if b8 >= 2 * SUBLANE:
        n_tiles = max(n_tiles, 2)
    tile_b = _round_up(pl.cdiv(b8, n_tiles), SUBLANE)
    b_pad = _round_up(b8, tile_b)
    grid = (b_pad // tile_b,)

    # Only materialize a padded copy of the state when padding is actually
    # needed (the old code always wrote + re-read a (b_pad, 128) f32 buffer).
    x_in = state.astype(jnp.float32)
    if b_pad != B or d_in_p != d_in:
        x_in = jnp.zeros((b_pad, d_in_p), jnp.float32).at[:B, :d_in].set(x_in)

    packed = pack_actor_params(params, mxu_dtype, d_in_p)
    kernel = _make_actor_kernel(hidden_true, hidden_pad, act_true,
                                layer_norm, mxu_dtype)

    in_specs = [pl.BlockSpec((tile_b, d_in_p), lambda i: (i, 0))]
    # Weights / packed bias tables: full-array blocks with a constant
    # index_map -> fetched once and kept VMEM-resident across the batch grid.
    # Single-buffered: double-buffering a never-changing block only doubles
    # its VMEM footprint and DMA descriptors.
    in_specs += [pl.BlockSpec(p.shape, lambda i: (0, 0),
                              pipeline_mode=pl.Buffered(1))
                 for p in packed]
    # Narrow (true action width) output block — last dim equals the full
    # array dim, so the (8,128) rule is satisfied.
    out_spec = pl.BlockSpec((tile_b, act_true), lambda i: (i, 0))

    all_dims = (d_in_p,) + hidden_pad + (act_pad,)
    flops = 2 * b_pad * sum(m * n for m, n in zip(all_dims[:-1], all_dims[1:]))
    transcendentals = b_pad * (act_true +
                               (len(hidden_pad) if layer_norm else 0))
    bytes_accessed = (b_pad * d_in_p * 4                      # state in
                      + b_pad * act_true * 4                  # actions out
                      + sum(int(p.size) * p.dtype.itemsize for p in packed))

    out = pl.pallas_call(
        kernel,
        out_shape=jax.ShapeDtypeStruct((b_pad, act_true), jnp.float32),
        grid=grid,
        in_specs=in_specs,
        out_specs=out_spec,
        compiler_params=pltpu.CompilerParams(
            dimension_semantics=("parallel",),
            # Explicit scoped-VMEM limit: well above our ~1-2 MiB usage, but
            # keeps v5e (16 MiB default) safe if tile_b / fc_dims grow.
            vmem_limit_bytes=32 * 1024 * 1024),
        cost_estimate=pl.CostEstimate(flops=flops,
                                      transcendentals=transcendentals,
                                      bytes_accessed=bytes_accessed),
    )(x_in, *packed)

    # Trim batch-padding rows only (the action dim is already true-width).
    return out if b_pad == B else out[:B]


# ----------------------------------------------------------------------------
# Plain-JAX reference.  mxu_dtype=bf16 mirrors the kernel's MXU operand cast;
# mxu_dtype=f32 is the exact PyTorch-equivalent math.
# ----------------------------------------------------------------------------
def actor_forward_ref(params, state, layer_norm=True, mxu_dtype=jnp.float32):
    x = state.astype(jnp.float32)
    for (w, b), (g, beta) in zip(params["fcs"], params["lns"]):
        y = jnp.dot(x.astype(mxu_dtype), w.astype(mxu_dtype),
                    preferred_element_type=jnp.float32) + b[None, :]
        if layer_norm:
            mean = jnp.mean(y, axis=-1, keepdims=True)
            var = jnp.mean((y - mean) ** 2, axis=-1, keepdims=True)
            y = (y - mean) * jax.lax.rsqrt(var + _LN_EPS) * g[None, :] + beta[None, :]
        x = jnp.maximum(y, 0.0)
    w_mu, b_mu = params["mu"]
    y = jnp.dot(x.astype(mxu_dtype), w_mu.astype(mxu_dtype),
                preferred_element_type=jnp.float32) + b_mu[None, :]
    return jnp.tanh(y)


if __name__ == "__main__":
    # Small shapes consistent with the module's forward: state is [B, input_dims].
    input_dims = 16
    fc_dims = [32, 32]
    n_actions = 4

    key = jax.random.PRNGKey(0)
    key, k_state = jax.random.split(key)
    params = init_actor_params(key, input_dims, fc_dims, n_actions)

    # B=8: no padding path; B=5: batch padding; B=40: multi-tile grid path.
    for B in (8, 5, 40):
        state = jax.random.normal(jax.random.fold_in(k_state, B),
                                  (B, input_dims), jnp.float32)

        out = jax.block_until_ready(actor_forward(params, state, layer_norm=True))
        assert out.shape == (B, n_actions)
        assert bool(jnp.all(jnp.isfinite(out)))

        # Tight check vs. a reference that uses the same bf16 MXU operands.
        ref_bf16 = actor_forward_ref(params, state, True, jnp.bfloat16)
        assert jnp.allclose(out, ref_bf16, atol=2e-3, rtol=2e-3), \
            "mismatch vs bf16-matched reference"

        # Loose sanity check vs. the exact f32 (PyTorch-equivalent) reference.
        ref_f32 = actor_forward_ref(params, state, True, jnp.float32)
        assert jnp.allclose(out, ref_f32, atol=8e-2, rtol=8e-2), \
            "mismatch vs f32 reference"

    # Exact-parity path: f32 MXU operands (mem-bound, so the extra MXU cost is
    # hidden); should match the PyTorch-equivalent reference tightly.
    state = jax.random.normal(jax.random.fold_in(k_state, 8),
                              (8, input_dims), jnp.float32)
    out_f32 = jax.block_until_ready(
        actor_forward(params, state, layer_norm=True, mxu_dtype=jnp.float32))
    ref_f32 = actor_forward_ref(params, state, True, jnp.float32)
    assert jnp.allclose(out_f32, ref_f32, atol=1e-4, rtol=1e-4), \
        "mismatch vs exact f32 reference"

    print("KERNEL_OK")
</pallas_src>

<mosaic_0001>
module attributes {stable_mosaic.version = 11 : i64} {
  func.func @kernel(%arg0: i32, %arg1: memref<8x16xf32, #tpu.memory_space<vmem>>, %arg2: memref<16x128xbf16, #tpu.memory_space<vmem>>, %arg3: memref<3x128xf32, #tpu.memory_space<vmem>>, %arg4: memref<128x128xbf16, #tpu.memory_space<vmem>>, %arg5: memref<3x128xf32, #tpu.memory_space<vmem>>, %arg6: memref<128x128xbf16, #tpu.memory_space<vmem>>, %arg7: memref<1x128xf32, #tpu.memory_space<vmem>>, %arg8: memref<8x4xf32, #tpu.memory_space<vmem>>) attributes {dimension_semantics = [#tpu.dimension_semantics<parallel>], iteration_bounds = array<i64: 1>, scalar_prefetch = 0 : i64, scratch_operands = 0 : i64, tpu.core_type = #tpu.core_type<tc>, window_params = [{transform_indices = @transform_0, window_bounds = array<i64: 8, 16>}, {pipeline_mode = #tpu.pipeline_mode<synchronous>, transform_indices = @transform_1, window_bounds = array<i64: 16, 128>}, {pipeline_mode = #tpu.pipeline_mode<synchronous>, transform_indices = @transform_2, window_bounds = array<i64: 3, 128>}, {pipeline_mode = #tpu.pipeline_mode<synchronous>, transform_indices = @transform_3, window_bounds = array<i64: 128, 128>}, {pipeline_mode = #tpu.pipeline_mode<synchronous>, transform_indices = @transform_4, window_bounds = array<i64: 3, 128>}, {pipeline_mode = #tpu.pipeline_mode<synchronous>, transform_indices = @transform_5, window_bounds = array<i64: 128, 128>}, {pipeline_mode = #tpu.pipeline_mode<synchronous>, transform_indices = @transform_6, window_bounds = array<i64: 1, 128>}, {transform_indices = @transform_7, window_bounds = array<i64: 8, 4>}]} {
    %0 = tpu.iota {dimensions = array<i32: 1>} : vector<1x128xi32>
    %c32_i32 = arith.constant 32 : i32
    %1 = vector.broadcast %c32_i32 : i32 to vector<1x128xi32>
    %2 = arith.cmpi slt, %0, %1 : vector<1x128xi32>
    %c0 = arith.constant 0 : index
    %c0_0 = arith.constant 0 : index
    %3 = vector.load %arg1[%c0, %c0_0] : memref<8x16xf32, #tpu.memory_space<vmem>>, vector<8x16xf32>
    %4 = arith.truncf %3 : vector<8x16xf32> to vector<8x16xbf16>
    %c0_1 = arith.constant 0 : index
    %c0_2 = arith.constant 0 : index
    %5 = vector.load %arg3[%c0_1, %c0_2] : memref<3x128xf32, #tpu.memory_space<vmem>>, vector<3x128xf32>
    %c0_3 = arith.constant 0 : index
    %c0_4 = arith.constant 0 : index
    %6 = vector.load %arg2[%c0_3, %c0_4] : memref<16x128xbf16, #tpu.memory_space<vmem>>, vector<16x128xbf16>
    %cst = arith.constant dense<0.000000e+00> : vector<8x128xf32>
    %7 = tpu.matmul %4, %6, %cst {dimension_numbers = #tpu.dot_dimension_numbers<[1], [0], [0], [1], [0, 0, 1, 1], [], []>} : vector<8x16xbf16>, vector<16x128xbf16>, vector<8x128xf32> -> vector<8x128xf32>
    %8 = vector.extract_strided_slice %5 {offsets = [0, 0], sizes = [1, 128], strides = [1, 1]} : vector<3x128xf32> to vector<1x128xf32>
    %9 = vector.broadcast %8 : vector<1x128xf32> to vector<8x128xf32>
    %10 = arith.addf %7, %9 : vector<8x128xf32>
    %cst_5 = arith.constant dense<0.000000e+00> : vector<8xf32>
    %11 = vector.multi_reduction <add>, %10, %cst_5 [1] : vector<8x128xf32> to vector<8xf32>
    %12 = vector.shape_cast %11 : vector<8xf32> to vector<8x1xf32>
    %cst_6 = arith.constant 3.125000e-02 : f32
    %13 = vector.broadcast %cst_6 : f32 to vector<8x1xf32>
    %14 = arith.mulf %12, %13 : vector<8x1xf32>
    %15 = vector.broadcast %14 : vector<8x1xf32> to vector<8x128xf32>
    %16 = arith.subf %10, %15 : vector<8x128xf32>
    %cst_7 = arith.constant 0.000000e+00 : f32
    %17 = vector.shape_cast %2 : vector<1x128xi1> to vector<1x128xi1>
    %18 = vector.broadcast %17 : vector<1x128xi1> to vector<8x128xi1>
    %19 = vector.broadcast %cst_7 : f32 to vector<8x128xf32>
    %20 = arith.select %18, %16, %19 : vector<8x128xi1>, vector<8x128xf32>
    %21 = arith.mulf %20, %20 : vector<8x128xf32>
    %cst_8 = arith.constant dense<0.000000e+00> : vector<8xf32>
    %22 = vector.multi_reduction <add>, %21, %cst_8 [1] : vector<8x128xf32> to vector<8xf32>
    %23 = vector.shape_cast %22 : vector<8xf32> to vector<8x1xf32>
    %cst_9 = arith.constant 3.125000e-02 : f32
    %24 = vector.broadcast %cst_9 : f32 to vector<8x1xf32>
    %25 = arith.mulf %23, %24 : vector<8x1xf32>
    %cst_10 = arith.constant 9.99999974E-6 : f32
    %26 = vector.broadcast %cst_10 : f32 to vector<8x1xf32>
    %27 = arith.addf %25, %26 : vector<8x1xf32>
    %28 = math.rsqrt %27 : vector<8x1xf32>
    %29 = vector.broadcast %28 : vector<8x1xf32> to vector<8x128xf32>
    %30 = arith.mulf %20, %29 : vector<8x128xf32>
    %31 = vector.extract_strided_slice %5 {offsets = [1, 0], sizes = [1, 128], strides = [1, 1]} : vector<3x128xf32> to vector<1x128xf32>
    %32 = vector.broadcast %31 : vector<1x128xf32> to vector<8x128xf32>
    %33 = arith.mulf %30, %32 : vector<8x128xf32>
    %34 = vector.extract_strided_slice %5 {offsets = [2, 0], sizes = [1, 128], strides = [1, 1]} : vector<3x128xf32> to vector<1x128xf32>
    %35 = vector.broadcast %34 : vector<1x128xf32> to vector<8x128xf32>
    %36 = arith.addf %33, %35 : vector<8x128xf32>
    %cst_11 = arith.constant 0.000000e+00 : f32
    %37 = vector.broadcast %cst_11 : f32 to vector<8x128xf32>
    %38 = arith.maximumf %36, %37 : vector<8x128xf32>
    %39 = arith.truncf %38 : vector<8x128xf32> to vector<8x128xbf16>
    %c0_12 = arith.constant 0 : index
    %c0_13 = arith.constant 0 : index
    %40 = vector.load %arg5[%c0_12, %c0_13] : memref<3x128xf32, #tpu.memory_space<vmem>>, vector<3x128xf32>
    %c0_14 = arith.constant 0 : index
    %c0_15 = arith.constant 0 : index
    %41 = vector.load %arg4[%c0_14, %c0_15] : memref<128x128xbf16, #tpu.memory_space<vmem>>, vector<128x128xbf16>
    %cst_16 = arith.constant dense<0.000000e+00> : vector<8x128xf32>
    %42 = tpu.matmul %39, %41, %cst_16 {dimension_numbers = #tpu.dot_dimension_numbers<[1], [0], [0], [1], [0, 0, 1, 1], [], []>} : vector<8x128xbf16>, vector<128x128xbf16>, vector<8x128xf32> -> vector<8x128xf32>
    %43 = vector.extract_strided_slice %40 {offsets = [0, 0], sizes = [1, 128], strides = [1, 1]} : vector<3x128xf32> to vector<1x128xf32>
    %44 = vector.broadcast %43 : vector<1x128xf32> to vector<8x128xf32>
    %45 = arith.addf %42, %44 : vector<8x128xf32>
    %cst_17 = arith.constant dense<0.000000e+00> : vector<8xf32>
    %46 = vector.multi_reduction <add>, %45, %cst_17 [1] : vector<8x128xf32> to vector<8xf32>
    %47 = vector.shape_cast %46 : vector<8xf32> to vector<8x1xf32>
    %cst_18 = arith.constant 3.125000e-02 : f32
    %48 = vector.broadcast %cst_18 : f32 to vector<8x1xf32>
    %49 = arith.mulf %47, %48 : vector<8x1xf32>
    %50 = vector.broadcast %49 : vector<8x1xf32> to vector<8x128xf32>
    %51 = arith.subf %45, %50 : vector<8x128xf32>
    %cst_19 = arith.constant 0.000000e+00 : f32
    %52 = vector.shape_cast %2 : vector<1x128xi1> to vector<1x128xi1>
    %53 = vector.broadcast %52 : vector<1x128xi1> to vector<8x128xi1>
    %54 = vector.broadcast %cst_19 : f32 to vector<8x128xf32>
    %55 = arith.select %53, %51, %54 : vector<8x128xi1>, vector<8x128xf32>
    %56 = arith.mulf %55, %55 : vector<8x128xf32>
    %cst_20 = arith.constant dense<0.000000e+00> : vector<8xf32>
    %57 = vector.multi_reduction <add>, %56, %cst_20 [1] : vector<8x128xf32> to vector<8xf32>
    %58 = vector.shape_cast %57 : vector<8xf32> to vector<8x1xf32>
    %cst_21 = arith.constant 3.125000e-02 : f32
    %59 = vector.broadcast %cst_21 : f32 to vector<8x1xf32>
    %60 = arith.mulf %58, %59 : vector<8x1xf32>
    %cst_22 = arith.constant 9.99999974E-6 : f32
    %61 = vector.broadcast %cst_22 : f32 to vector<8x1xf32>
    %62 = arith.addf %60, %61 : vector<8x1xf32>
    %63 = math.rsqrt %62 : vector<8x1xf32>
    %64 = vector.broadcast %63 : vector<8x1xf32> to vector<8x128xf32>
    %65 = arith.mulf %55, %64 : vector<8x128xf32>
    %66 = vector.extract_strided_slice %40 {offsets = [1, 0], sizes = [1, 128], strides = [1, 1]} : vector<3x128xf32> to vector<1x128xf32>
    %67 = vector.broadcast %66 : vector<1x128xf32> to vector<8x128xf32>
    %68 = arith.mulf %65, %67 : vector<8x128xf32>
    %69 = vector.extract_strided_slice %40 {offsets = [2, 0], sizes = [1, 128], strides = [1, 1]} : vector<3x128xf32> to vector<1x128xf32>
    %70 = vector.broadcast %69 : vector<1x128xf32> to vector<8x128xf32>
    %71 = arith.addf %68, %70 : vector<8x128xf32>
    %cst_23 = arith.constant 0.000000e+00 : f32
    %72 = vector.broadcast %cst_23 : f32 to vector<8x128xf32>
    %73 = arith.maximumf %71, %72 : vector<8x128xf32>
    %74 = arith.truncf %73 : vector<8x128xf32> to vector<8x128xbf16>
    %c0_24 = arith.constant 0 : index
    %c0_25 = arith.constant 0 : index
    %75 = vector.load %arg7[%c0_24, %c0_25] : memref<1x128xf32, #tpu.memory_space<vmem>>, vector<1x128xf32>
    %c0_26 = arith.constant 0 : index
    %c0_27 = arith.constant 0 : index
    %76 = vector.load %arg6[%c0_26, %c0_27] : memref<128x128xbf16, #tpu.memory_space<vmem>>, vector<128x128xbf16>
    %cst_28 = arith.constant dense<0.000000e+00> : vector<8x128xf32>
    %77 = tpu.matmul %74, %76, %cst_28 {dimension_numbers = #tpu.dot_dimension_numbers<[1], [0], [0], [1], [0, 0, 1, 1], [], []>} : vector<8x128xbf16>, vector<128x128xbf16>, vector<8x128xf32> -> vector<8x128xf32>
    %78 = vector.broadcast %75 : vector<1x128xf32> to vector<8x128xf32>
    %79 = arith.addf %77, %78 : vector<8x128xf32>
    %80 = vector.extract_strided_slice %79 {offsets = [0, 0], sizes = [8, 4], strides = [1, 1]} : vector<8x128xf32> to vector<8x4xf32>
    %81 = math.tanh %80 : vector<8x4xf32>
    %c0_29 = arith.constant 0 : index
    %c0_30 = arith.constant 0 : index
    %82 = vector.load %arg8[%c0_29, %c0_30] : memref<8x4xf32, #tpu.memory_space<vmem>>, vector<8x4xf32>
    tpu.vector_store %arg8[%c0_29, %c0_30], %81 {strides = array<i32>} : memref<8x4xf32, #tpu.memory_space<vmem>>, vector<8x4xf32>,
    return
  }
  func.func @transform_0(%arg0: i32) -> (i32, i32) {
    %c0_i32 = arith.constant 0 : i32
    %c0_i32_0 = arith.constant 0 : i32
    return %arg0, %c0_i32 : i32, i32
  }
  func.func @transform_1(%arg0: i32) -> (i32, i32) {
    %c0_i32 = arith.constant 0 : i32
    %c0_i32_0 = arith.constant 0 : i32
    %c0_i32_1 = arith.constant 0 : i32
    return %c0_i32, %c0_i32_0 : i32, i32
  }
  func.func @transform_2(%arg0: i32) -> (i32, i32) {
    %c0_i32 = arith.constant 0 : i32
    %c0_i32_0 = arith.constant 0 : i32
    %c0_i32_1 = arith.constant 0 : i32
    return %c0_i32, %c0_i32_0 : i32, i32
  }
  func.func @transform_3(%arg0: i32) -> (i32, i32) {
    %c0_i32 = arith.constant 0 : i32
    %c0_i32_0 = arith.constant 0 : i32
    %c0_i32_1 = arith.constant 0 : i32
    return %c0_i32, %c0_i32_0 : i32, i32
  }
  func.func @transform_4(%arg0: i32) -> (i32, i32) {
    %c0_i32 = arith.constant 0 : i32
    %c0_i32_0 = arith.constant 0 : i32
    %c0_i32_1 = arith.constant 0 : i32
    return %c0_i32, %c0_i32_0 : i32, i32
  }
  func.func @transform_5(%arg0: i32) -> (i32, i32) {
    %c0_i32 = arith.constant 0 : i32
    %c0_i32_0 = arith.constant 0 : i32
    %c0_i32_1 = arith.constant 0 : i32
    return %c0_i32, %c0_i32_0 : i32, i32
  }
  func.func @transform_6(%arg0: i32) -> (i32, i32) {
    %c0_i32 = arith.constant 0 : i32
    %c0_i32_0 = arith.constant 0 : i32
    %c0_i32_1 = arith.constant 0 : i32
    return %c0_i32, %c0_i32_0 : i32, i32
  }
  func.func @transform_7(%arg0: i32) -> (i32, i32) {
    %c0_i32 = arith.constant 0 : i32
    %c0_i32_0 = arith.constant 0 : i32
    return %arg0, %c0_i32 : i32, i32
  }
}

</mosaic_0001>

<llo_original>
// kernel: actor_forward.1
$region0: #{actor_forward.1}
  #allocation0 [shape = 'u32[]', space=smem, size = 0x4, offset = 0x4, fixed_abs, tag = 'smem constant byte address 0x4 - core index']
  #allocation1 [shape = 'u32[144,128]{1,0:T(1,128)}', space=vmem, size = 0x12000, scoped, tag = 'internal scratch']
  %s0 = inlined_call_operand.vmem [shape: f32[8,16], index: 0, kind: input, shape index: {}]
  %s1 = inlined_call_operand.vmem [shape: bf16[16,128], index: 1, kind: input, shape index: {}]
  %s2 = inlined_call_operand.vmem [shape: f32[3,128], index: 2, kind: input, shape index: {}]
  %s3 = inlined_call_operand.vmem [shape: bf16[128,128], index: 3, kind: input, shape index: {}]
  %s4 = inlined_call_operand.vmem [shape: f32[3,128], index: 4, kind: input, shape index: {}]
  %s5 = inlined_call_operand.vmem [shape: bf16[128,128], index: 5, kind: input, shape index: {}]
  %s6 = inlined_call_operand.vmem [shape: f32[1,128], index: 6, kind: input, shape index: {}]
  %s7 = inlined_call_operand.vmem [shape: f32[8,4], index: 7, kind: output, shape index: {}]
  %s8 = sld [smem:[#allocation0]]
  $region38: #{actor_forward.1} parent=0
    _
  %s10 = ssub.s32 1, %s8
  %s11 = scalar_select 0, %s10, %s8
  // Predicated region
  $region2: #{actor_forward.1} parent=0 // pred_check
    _
  $region3: #{actor_forward.1} parent=0 // pred_check_branch
    %13 = sbr.rel (0) target = $region5
  $region4: #{actor_forward.1} parent=0 // pred_region
    _
  $region5: #{actor_forward.1} parent=0 // pred_fallthru
    _
  // Predicated region
  $region6: #{actor_forward.1} parent=0 // pred_check
    _
  $region7: #{actor_forward.1} parent=0 // pred_check_branch
    %15 = sbr.rel (0) target = $region9
  $region8: #{actor_forward.1} parent=0 // pred_region
    _
  $region9: #{actor_forward.1} parent=0 // pred_fallthru
    _
  // Predicated region
  $region10: #{actor_forward.1} parent=0 // pred_check
    _
  $region11: #{actor_forward.1} parent=0 // pred_check_branch
    %17 = sbr.rel (0) target = $region13
  $region12: #{actor_forward.1} parent=0 // pred_region
    _
  $region13: #{actor_forward.1} parent=0 // pred_fallthru
    _
  // Predicated region
  $region14: #{actor_forward.1} parent=0 // pred_check
    _
  $region15: #{actor_forward.1} parent=0 // pred_check_branch
    %19 = sbr.rel (0) target = $region17
  $region16: #{actor_forward.1} parent=0 // pred_region
    _
  $region17: #{actor_forward.1} parent=0 // pred_fallthru
    _
  // Predicated region
  $region18: #{actor_forward.1} parent=0 // pred_check
    _
  $region19: #{actor_forward.1} parent=0 // pred_check_branch
    %21 = sbr.rel (0) target = $region21
  $region20: #{actor_forward.1} parent=0 // pred_region
    _
  $region21: #{actor_forward.1} parent=0 // pred_fallthru
    _
  // Predicated region
  $region22: #{actor_forward.1} parent=0 // pred_check
    _
  $region23: #{actor_forward.1} parent=0 // pred_check_branch
    %23 = sbr.rel (0) target = $region25
  $region24: #{actor_forward.1} parent=0 // pred_region
    _
  $region25: #{actor_forward.1} parent=0 // pred_fallthru
    _
  // Predicated region
  $region26: #{actor_forward.1} parent=0 // pred_check
    _
  $region27: #{actor_forward.1} parent=0 // pred_check_branch
    %25 = sbr.rel (0) target = $region29
  $region28: #{actor_forward.1} parent=0 // pred_region
    _
  $region29: #{actor_forward.1} parent=0 // pred_fallthru
    _
  %v27 = vlaneseq
  %v28 = vand.u32 %v27, 127
  %vm29 = vcmp.lt.s32.totalorder %v28, 32
  %v30 = vld [vmem:[%s0] sm:$0xff]
  %v31 = vpack.c.bf16 %v30, %v30
  %v32 = vld [vmem:[%s2] sm:$0x7]
  %v33 = vld [vmem:[%s1] sm:$0xf]
  %v34 = vld [vmem:[%s1 + $0x4] sm:$0xf]
  %v35 = vlaneseq
  %v36 = vshrl.u32 %v35, 7
  %v37 = vsub.s32 0, %v36
  %v38 = vrot.slane %v32, %v37
  %v41 = vunpack.c.l.b16 %v33
  %v42 = vunpack.c.l.b16 %v34
  %v43 = vpack.c.b16 %v42, %v41
  %vm45 = vcmask 130048
  %v47 = vsel %vm45, %v31, 0
  %49 = vmatprep.subr.bf16.mxu0 0
  %50 = vmatpush1.bf16.msra.mxu0 %v43
  %51 = vmatprep.subr.bf16.mxu0 0
  %52 = vmatpush1.bf16.msra.mxu0 0
  %53 = vmatprep.subr.bf16.mxu0 0
  %54 = vmatpush1.bf16.msra.mxu0 0
  %55 = vmatprep.subr.bf16.mxu0 0
  %56 = vmatpush1.bf16.msra.mxu0 0
  %57 = vmatprep.subr.bf16.mxu0 0
  %58 = vmatpush1.bf16.msra.mxu0 0
  %59 = vmatprep.subr.bf16.mxu0 0
  %60 = vmatpush1.bf16.msra.mxu0 0
  %61 = vmatprep.subr.bf16.mxu0 0
  %62 = vmatpush1.bf16.msra.mxu0 0
  %63 = vmatprep.subr.bf16.mxu0 0
  %64 = vmatpush1.bf16.msra.mxu0 0
  %65 = vmatprep.subr.bf16.mxu0 0
  %66 = vmatpush1.bf16.msra.mxu0 0
  %67 = vmatprep.subr.bf16.mxu0 0
  %68 = vmatpush1.bf16.msra.mxu0 0
  %69 = vmatprep.subr.bf16.mxu0 0
  %70 = vmatpush1.bf16.msra.mxu0 0
  %71 = vmatprep.subr.bf16.mxu0 0
  %72 = vmatpush1.bf16.msra.mxu0 0
  %73 = vmatprep.subr.bf16.mxu0 0
  %74 = vmatpush1.bf16.msra.mxu0 0
  %75 = vmatprep.subr.bf16.mxu0 0
  %76 = vmatpush1.bf16.msra.mxu0 0
  %77 = vmatprep.subr.bf16.mxu0 0
  %78 = vmatpush1.bf16.msra.mxu0 0
  %79 = vmatprep.subr.bf16.mxu0 0
  %80 = vmatpush1.bf16.msra.mxu0 0
  %81 = vmatprep.mubr.bf16.mxu0 0
  %82 = vmatmul.mubr.bf16.gmra.mrb[0].mxu0 %v47
  %v83 = vpop.f32.mrb[0].mxu0
  %v84 = vadd.f32 %v38, %v83
  %v85 = vpop.f32.mrb[0].mxu0
  %v86 = vpop.f32.mrb[0].mxu0
  %v87 = vpop.f32.mrb[0].mxu0
  %88 = vdwg.mxu0
  %89 = vadd.xlane.f32.xlu0 %v84
  %v90 = vpop.xlane.xlu0 %89
  %v91 = vmul.f32 %v90, 0.03125
  %v92 = vsub.f32 %v84, %v91
  %v93 = vsel %vm29, 1, 0
  %vm94 = vcmp.eq.s32.totalorder %v93, 1
  %v95 = vsel %vm94, %v92, 0.0
  %v96 = vmul.f32 %v95, %v95
  %97 = vadd.xlane.f32.xlu0 %v96
  %v98 = vpop.xlane.xlu0 %97
  %v99 = vmul.f32 %v98, 0.03125
  %v100 = vadd.f32 %v99, 1e-05
  %v101 = vrsqrt.pop %v100
  %v102 = vmul.f32 %v95, %v101
  %v103 = vlaneseq
  %v104 = vshrl.u32 %v103, 7
  %v105 = vsub.s32 1, %v104
  %v106 = vrot.slane %v32, %v105
  %v107 = vmul.f32 %v102, %v106
  %v108 = vlaneseq
  %v109 = vshrl.u32 %v108, 7
  %v110 = vsub.s32 2, %v109
  %v111 = vrot.slane %v32, %v110
  %v112 = vadd.f32 %v107, %v111
  %v113 = vmax.f32 %v112, 0.0
  %v114 = vpack.c.bf16 %v113, %v113
  %v115 = vld [vmem:[%s4] sm:$0x7]
  %v116 = vld [vmem:[%s3] sm:$0xf]
  %v117 = vld [vmem:[%s3 + $0x4] sm:$0xf]
  %v118 = vld [vmem:[%s3 + $0x8] sm:$0xf]
  %v119 = vld [vmem:[%s3 + $0xc] sm:$0xf]
  %v120 = vld [vmem:[%s3 + $0x10] sm:$0xf]
  %v121 = vld [vmem:[%s3 + $0x14] sm:$0xf]
  %v122 = vld [vmem:[%s3 + $0x18] sm:$0xf]
  %v123 = vld [vmem:[%s3 + $0x1c] sm:$0xf]
  %v124 = vld [vmem:[%s3 + $0x20] sm:$0xf]
  %v125 = vld [vmem:[%s3 + $0x24] sm:$0xf]
  %v126 = vld [vmem:[%s3 + $0x28] sm:$0xf]
  %v127 = vld [vmem:[%s3 + $0x2c] sm:$0xf]
  %v128 = vld [vmem:[%s3 + $0x30] sm:$0xf]
  %v129 = vld [vmem:[%s3 + $0x34] sm:$0xf]
  %v130 = vld [vmem:[%s3 + $0x38] sm:$0xf]
  %v131 = vld [vmem:[%s3 + $0x3c] sm:$0xf]
  %v132 = vlaneseq
  %v133 = vshrl.u32 %v132, 7
  %v134 = vsub.s32 0, %v133
  %v135 = vrot.slane %v115, %v134
  %v152 = vunpack.c.l.b16 %v116
  %v153 = vunpack.c.l.b16 %v117
  %v154 = vunpack.c.l.b16 %v118
  %v155 = vunpack.c.l.b16 %v119
  %v156 = vunpack.c.l.b16 %v120
  %v157 = vunpack.c.l.b16 %v121
  %v158 = vunpack.c.l.b16 %v122
  %v159 = vunpack.c.l.b16 %v123
  %v160 = vunpack.c.l.b16 %v124
  %v161 = vunpack.c.l.b16 %v125
  %v162 = vunpack.c.l.b16 %v126
  %v163 = vunpack.c.l.b16 %v127
  %v164 = vunpack.c.l.b16 %v128
  %v165 = vunpack.c.l.b16 %v129
  %v166 = vunpack.c.l.b16 %v130
  %v167 = vunpack.c.l.b16 %v131
  %v168 = vpack.c.b16 %v153, %v152
  %v169 = vpack.c.b16 %v155, %v154
  %v170 = vpack.c.b16 %v157, %v156
  %v171 = vpack.c.b16 %v159, %v158
  %v172 = vpack.c.b16 %v161, %v160
  %v173 = vpack.c.b16 %v163, %v162
  %v174 = vpack.c.b16 %v165, %v164
  %v175 = vpack.c.b16 %v167, %v166
  %184 = vmatprep.subr.bf16.mxu0 0
  %185 = vmatpush1.bf16.msra.mxu0 %v168
  %186 = vmatprep.subr.bf16.mxu0 0
  %187 = vmatpush1.bf16.msra.mxu0 %v169
  %188 = vmatprep.subr.bf16.mxu0 0
  %189 = vmatpush1.bf16.msra.mxu0 %v170
  %190 = vmatprep.subr.bf16.mxu0 0
  %191 = vmatpush1.bf16.msra.mxu0 %v171
  %192 = vmatprep.subr.bf16.mxu0 0
  %193 = vmatpush1.bf16.msra.mxu0 %v172
  %194 = vmatprep.subr.bf16.mxu0 0
  %195 = vmatpush1.bf16.msra.mxu0 %v173
  %196 = vmatprep.subr.bf16.mxu0 0
  %197 = vmatpush1.bf16.msra.mxu0 %v174
  %198 = vmatprep.subr.bf16.mxu0 0
  %199 = vmatpush1.bf16.msra.mxu0 %v175
  %200 = vmatprep.subr.bf16.mxu0 0
  %201 = vmatpush1.bf16.msra.mxu0 0
  %202 = vmatprep.subr.bf16.mxu0 0
  %203 = vmatpush1.bf16.msra.mxu0 0
  %204 = vmatprep.subr.bf16.mxu0 0
  %205 = vmatpush1.bf16.msra.mxu0 0
  %206 = vmatprep.subr.bf16.mxu0 0
  %207 = vmatpush1.bf16.msra.mxu0 0
  %208 = vmatprep.subr.bf16.mxu0 0
  %209 = vmatpush1.bf16.msra.mxu0 0
  %210 = vmatprep.subr.bf16.mxu0 0
  %211 = vmatpush1.bf16.msra.mxu0 0
  %212 = vmatprep.subr.bf16.mxu0 0
  %213 = vmatpush1.bf16.msra.mxu0 0
  %214 = vmatprep.subr.bf16.mxu0 0
  %215 = vmatpush1.bf16.msra.mxu0 0
  %216 = vmatprep.mubr.bf16.mxu0 0
  %217 = vmatmul.mubr.bf16.gmra.mrb[0].mxu0 %v114
  %v218 = vpop.f32.mrb[0].mxu0
  %v219 = vadd.f32 %v135, %v218
  %v220 = vpop.f32.mrb[0].mxu0
  %v221 = vpop.f32.mrb[0].mxu0
  %v222 = vpop.f32.mrb[0].mxu0
  %223 = vdwg.mxu0
  %224 = vadd.xlane.f32.xlu0 %v219
  %v225 = vpop.xlane.xlu0 %224
  %v226 = vmul.f32 %v225, 0.03125
  %v227 = vsub.f32 %v219, %v226
  %v228 = vsel %vm94, %v227, 0.0
  %v229 = vmul.f32 %v228, %v228
  %230 = vadd.xlane.f32.xlu0 %v229
  %v231 = vpop.xlane.xlu0 %230
  %v232 = vmul.f32 %v231, 0.03125
  %v233 = vadd.f32 %v232, 1e-05
  %v234 = vrsqrt.pop %v233
  %v235 = vmul.f32 %v228, %v234
  %v236 = vlaneseq
  %v237 = vshrl.u32 %v236, 7
  %v238 = vsub.s32 1, %v237
  %v239 = vrot.slane %v115, %v238
  %v240 = vmul.f32 %v235, %v239
  %v241 = vlaneseq
  %v242 = vshrl.u32 %v241, 7
  %v243 = vsub.s32 2, %v242
  %v244 = vrot.slane %v115, %v243
  %v245 = vadd.f32 %v240, %v244
  %v246 = vmax.f32 %v245, 0.0
  %v247 = vpack.c.bf16 %v246, %v246
  %v248 = vld [vmem:[%s6] sm:$0x1]
  %v249 = vld [vmem:[%s5] sm:$0xf]
  %v250 = vld [vmem:[%s5 + $0x4] sm:$0xf]
  %v251 = vld [vmem:[%s5 + $0x8] sm:$0xf]
  %v252 = vld [vmem:[%s5 + $0xc] sm:$0xf]
  %v253 = vld [vmem:[%s5 + $0x10] sm:$0xf]
  %v254 = vld [vmem:[%s5 + $0x14] sm:$0xf]
  %v255 = vld [vmem:[%s5 + $0x18] sm:$0xf]
  %v256 = vld [vmem:[%s5 + $0x1c] sm:$0xf]
  %v257 = vld [vmem:[%s5 + $0x20] sm:$0xf]
  %v258 = vld [vmem:[%s5 + $0x24] sm:$0xf]
  %v259 = vld [vmem:[%s5 + $0x28] sm:$0xf]
  %v260 = vld [vmem:[%s5 + $0x2c] sm:$0xf]
  %v261 = vld [vmem:[%s5 + $0x30] sm:$0xf]
  %v262 = vld [vmem:[%s5 + $0x34] sm:$0xf]
  %v263 = vld [vmem:[%s5 + $0x38] sm:$0xf]
  %v264 = vld [vmem:[%s5 + $0x3c] sm:$0xf]
  %v266 = vlaneseq
  %v267 = vshrl.u32 %v266, 7
  %v268 = vsub.s32 0, %v267
  %v269 = vrot.slane %v248, %v268
  %v287 = vunpack.c.l.b16 %v249
  %v288 = vunpack.c.l.b16 %v250
  %v289 = vunpack.c.l.b16 %v251
  %v290 = vunpack.c.l.b16 %v252
  %v291 = vunpack.c.l.b16 %v253
  %v292 = vunpack.c.l.b16 %v254
  %v293 = vunpack.c.l.b16 %v255
  %v294 = vunpack.c.l.b16 %v256
  %v295 = vunpack.c.l.b16 %v257
  %v296 = vunpack.c.l.b16 %v258
  %v297 = vunpack.c.l.b16 %v259
  %v298 = vunpack.c.l.b16 %v260
  %v299 = vunpack.c.l.b16 %v261
  %v300 = vunpack.c.l.b16 %v262
  %v301 = vunpack.c.l.b16 %v263
  %v302 = vunpack.c.l.b16 %v264
  %v303 = vpack.c.b16 %v288, %v287
  %v304 = vpack.c.b16 %v290, %v289
  %v305 = vpack.c.b16 %v292, %v291
  %v306 = vpack.c.b16 %v294, %v293
  %v307 = vpack.c.b16 %v296, %v295
  %v308 = vpack.c.b16 %v298, %v297
  %v309 = vpack.c.b16 %v300, %v299
  %v310 = vpack.c.b16 %v302, %v301
  %319 = vmatprep.subr.bf16.mxu0 0
  %320 = vmatpush1.bf16.msra.mxu0 %v303
  %321 = vmatprep.subr.bf16.mxu0 0
  %322 = vmatpush1.bf16.msra.mxu0 %v304
  %323 = vmatprep.subr.bf16.mxu0 0
  %324 = vmatpush1.bf16.msra.mxu0 %v305
  %325 = vmatprep.subr.bf16.mxu0 0
  %326 = vmatpush1.bf16.msra.mxu0 %v306
  %327 = vmatprep.subr.bf16.mxu0 0
  %328 = vmatpush1.bf16.msra.mxu0 %v307
  %329 = vmatprep.subr.bf16.mxu0 0
  %330 = vmatpush1.bf16.msra.mxu0 %v308
  %331 = vmatprep.subr.bf16.mxu0 0
  %332 = vmatpush1.bf16.msra.mxu0 %v309
  %333 = vmatprep.subr.bf16.mxu0 0
  %334 = vmatpush1.bf16.msra.mxu0 %v310
  %335 = vmatprep.subr.bf16.mxu0 0
  %336 = vmatpush1.bf16.msra.mxu0 0
  %337 = vmatprep.subr.bf16.mxu0 0
  %338 = vmatpush1.bf16.msra.mxu0 0
  %339 = vmatprep.subr.bf16.mxu0 0
  %340 = vmatpush1.bf16.msra.mxu0 0
  %341 = vmatprep.subr.bf16.mxu0 0
  %342 = vmatpush1.bf16.msra.mxu0 0
  %343 = vmatprep.subr.bf16.mxu0 0
  %344 = vmatpush1.bf16.msra.mxu0 0
  %345 = vmatprep.subr.bf16.mxu0 0
  %346 = vmatpush1.bf16.msra.mxu0 0
  %347 = vmatprep.subr.bf16.mxu0 0
  %348 = vmatpush1.bf16.msra.mxu0 0
  %349 = vmatprep.subr.bf16.mxu0 0
  %350 = vmatpush1.bf16.msra.mxu0 0
  %351 = vmatprep.mubr.bf16.mxu0 0
  %352 = vmatmul.mubr.bf16.gmra.mrb[0].mxu0 %v247
  %v353 = vpop.f32.mrb[0].mxu0
  %v354 = vadd.f32 %v269, %v353
  %v355 = vpop.f32.mrb[0].mxu0
  %v356 = vpop.f32.mrb[0].mxu0
  %v357 = vpop.f32.mrb[0].mxu0
  %358 = vdwg.mxu0
  %v359 = vtanh.pop %v354
  %vm360 = vcmask 31744
  %361 = vst.msk [vmem:[%s7] sm:$0xff] %vm360, %v359
  // Predicated region
  $region30: #{actor_forward.1} parent=0 // pred_check
    _
  $region31: #{actor_forward.1} parent=0 // pred_check_branch
    %363 = sbr.rel (0) target = $region33
  $region32: #{actor_forward.1} parent=0 // pred_region
    _
  $region33: #{actor_forward.1} parent=0 // pred_fallthru
    _
  // Predicated region
  $region34: #{actor_forward.1} parent=0 // pred_check
    _
  $region35: #{actor_forward.1} parent=0 // pred_check_branch
    %365 = sbr.rel (0) target = $region37
  $region36: #{actor_forward.1} parent=0 // pred_region
    _
  $region37: #{actor_forward.1} parent=0 // pred_fallthru
    _

</llo_original>
